<compile_context>
chip_gen: v6e
topology: v6e:2x2x1
jax: 0.10.0
libtpu: 0.0.40
codegen_flags: <defaults>
</compile_context>

<pallas_src>
import functools

import jax
import jax.numpy as jnp
from jax.experimental import pallas as pl
from jax.experimental.pallas import tpu as pltpu


def _round_up(x, m):
    return ((x + m - 1) // m) * m


def domain_classifier_kernel(x_ref, w1_ref, w2_ref, w3_ref, b_ref, o_ref, *,
                             h1w, h2w, ow, b2_off, b3_off):
    # Cast x in-kernel (cheap VPU pack; avoids a wrapper-side HBM round trip).
    x = x_ref[...].astype(w1_ref.dtype)
    b1 = b_ref[:, 0:h1w]
    b2 = b_ref[:, b2_off:b2_off + h2w]
    b3 = b_ref[:, b3_off:b3_off + ow]
    # hidden = relu(linear1(x))  -- f32 accumulation, f32 bias/ReLU epilogue
    h1 = jnp.dot(x, w1_ref[...], preferred_element_type=jnp.float32) + b1
    h1 = jnp.maximum(h1, 0.0).astype(w2_ref.dtype)
    # hidden2 = relu(linear2(hidden))
    h2 = jnp.dot(h1, w2_ref[...], preferred_element_type=jnp.float32) + b2
    h2 = jnp.maximum(h2, 0.0).astype(w3_ref.dtype)
    # out = linear3(hidden2)
    o_ref[...] = (jnp.dot(h2, w3_ref[...], preferred_element_type=jnp.float32)
                  + b3).astype(o_ref.dtype)


@functools.partial(jax.jit, static_argnames=("block_b", "matmul_dtype", "fold"))
def domain_classifier(x, w1, b1, w2, b2, w3, b3, *, block_b=16384,
                      matmul_dtype=jnp.bfloat16, fold=None):
    """x: [B, E]; w*: [in, out] (transpose of torch's [out, in]); b*: [out] or
    [1, out].  Returns [B, 2] float32.

    block_b: batch-tile size in *original* rows per grid step.  Per-step VMEM
        is tiny (~tb*200 B), so 8k-32k rows is fine on every generation; the
        tile is auto-capped so large batches keep >= 2 grid steps (v7x megacore).
    matmul_dtype: MXU operand dtype (default bf16; f32 accumulation + epilogue).
        Pass None for exact-f32 matmuls.
    fold: batch rows packed into the 128-lane axis (default: auto = 128 // E
        when E divides 128).
    """
    B, E = x.shape
    H1 = w1.shape[1]
    H2 = w2.shape[1]
    O = w3.shape[1]
    b1 = b1.reshape(1, H1)
    b2 = b2.reshape(1, H2)
    b3 = b3.reshape(1, O)

    mm_dtype = (jnp.dtype(matmul_dtype) if matmul_dtype is not None
                else jnp.dtype(x.dtype))

    # ---- fold batch rows into the lane axis (lane-dense vregs / MXU / stores) ----
    if fold is None:
        fold = 128 // E if (E < 128 and 128 % E == 0) else 1
    fold = max(1, int(fold))

    Bp = _round_up(B, fold)
    if Bp != B:
        x = jnp.pad(x, ((0, Bp - B), (0, 0)))   # rows are contiguous: cheap
    Bf = Bp // fold
    xf = x.reshape(Bf, fold * E)                # free reshape (row-major)

    def blockdiag(w):
        if fold == 1:
            return w.astype(mm_dtype)
        # block-diagonal with `fold` copies of w: [fold*in, fold*out]
        return jnp.kron(jnp.eye(fold, dtype=w.dtype), w).astype(mm_dtype)

    w1f, w2f, w3f = blockdiag(w1), blockdiag(w2), blockdiag(w3)
    h1w, h2w, ow = fold * H1, fold * H2, fold * O

    # Fused bias: single (1, N) f32 input, segments at 128-lane (vreg) aligned
    # offsets so in-kernel static slices need no lane rotation.
    seg1 = _round_up(h1w, 128)
    seg2 = _round_up(h2w, 128)
    seg3 = _round_up(ow, 128)
    bias = jnp.zeros((1, seg1 + seg2 + seg3), jnp.float32)
    bias = bias.at[:, 0:h1w].set(jnp.tile(b1, (1, fold)).astype(jnp.float32))
    bias = bias.at[:, seg1:seg1 + h2w].set(
        jnp.tile(b2, (1, fold)).astype(jnp.float32))
    bias = bias.at[:, seg1 + seg2:seg1 + seg2 + ow].set(
        jnp.tile(b3, (1, fold)).astype(jnp.float32))

    # ---- batch tiling over folded rows ----
    tb = max(8, min(block_b // fold, _round_up(Bf, 8)))
    if Bf >= 2048:
        # Enough work: keep >= 2 grid steps so the "parallel" batch axis can
        # actually be split across both TensorCores on v7x.
        tb = min(tb, _round_up(pl.cdiv(Bf, 2), 8))
    grid = (pl.cdiv(Bf, tb),)

    kernel = functools.partial(
        domain_classifier_kernel,
        h1w=h1w, h2w=h2w, ow=ow, b2_off=seg1, b3_off=seg1 + seg2)

    # x / output tiled over (folded) batch; weights & fused bias stay resident
    # in VMEM (constant index_map) -> only x tiles are re-DMA'd per step.
    x_spec = pl.BlockSpec((tb, fold * E), lambda i: (i, 0))
    w1_spec = pl.BlockSpec(w1f.shape, lambda i: (0, 0))
    w2_spec = pl.BlockSpec(w2f.shape, lambda i: (0, 0))
    w3_spec = pl.BlockSpec(w3f.shape, lambda i: (0, 0))
    b_spec = pl.BlockSpec(bias.shape, lambda i: (0, 0))
    out_spec = pl.BlockSpec((tb, ow), lambda i: (i, 0))

    welt = jnp.dtype(mm_dtype).itemsize
    flops = 2 * Bf * (fold * E * h1w + h1w * h2w + h2w * ow)
    bytes_accessed = (Bf * fold * E * jnp.dtype(x.dtype).itemsize   # x read
                      + (fold * E * h1w + h1w * h2w + h2w * ow) * welt  # weights
                      + bias.size * 4                               # fused bias
                      + Bf * ow * 4)                                # output
    cost = pl.CostEstimate(flops=flops, transcendentals=0,
                           bytes_accessed=bytes_accessed)

    outf = pl.pallas_call(
        kernel,
        out_shape=jax.ShapeDtypeStruct((Bf, ow), jnp.float32),
        grid_spec=pltpu.PrefetchScalarGridSpec(
            num_scalar_prefetch=0,
            grid=grid,
            in_specs=[x_spec, w1_spec, w2_spec, w3_spec, b_spec],
            out_specs=out_spec,
        ),
        compiler_params=pltpu.CompilerParams(
            dimension_semantics=("parallel",),   # batch tiles across TCs (v7x)
        ),
        cost_estimate=cost,
    )(xf, w1f, w2f, w3f, bias)

    # Undo the lane fold: [Bf, fold*O] row-major == [Bp, O]; drop padded rows.
    return outf.reshape(Bp, O)[:B]


def init_linear(key, fan_in, fan_out):
    """Deterministic init mimicking PyTorch nn.Linear (uniform +/- 1/sqrt(fan_in))."""
    kw, kb = jax.random.split(key)
    bound = 1.0 / jnp.sqrt(fan_in)
    # store weight as [in, out] (transpose of torch's [out, in])
    w = jax.random.uniform(kw, (fan_in, fan_out), jnp.float32, -bound, bound)
    b = jax.random.uniform(kb, (1, fan_out), jnp.float32, -bound, bound)
    return w, b


def _reference(x, w1, b1, w2, b2, w3, b3):
    h1 = jnp.maximum(x @ w1 + b1, 0.0)
    h2 = jnp.maximum(h1 @ w2 + b2, 0.0)
    return h2 @ w3 + b3


if __name__ == "__main__":
    embeddings, hidden1, hidden2 = 32, 32, 16

    key = jax.random.PRNGKey(0)
    kx, k1, k2, k3, kx2, kx3 = jax.random.split(key, 6)

    w1, b1 = init_linear(k1, embeddings, hidden1)
    w2, b2 = init_linear(k2, hidden1, hidden2)
    w3, b3 = init_linear(k3, hidden2, 2)

    # --- Test 1: small batch, single grid step, exact f32 path ---
    batch = 8
    x = jax.random.normal(kx, (batch, embeddings), jnp.float32)
    out = jax.block_until_ready(
        domain_classifier(x, w1, b1, w2, b2, w3, b3, matmul_dtype=None))
    ref = _reference(x, w1, b1, w2, b2, w3, b3)
    assert out.shape == (batch, 2), out.shape
    assert jnp.allclose(out, ref, atol=1e-5, rtol=1e-5), "f32 single-tile mismatch"

    # --- Test 2: multi-step grid with a ragged last tile, f32 ---
    batch2 = 200
    x2 = jax.random.normal(kx2, (batch2, embeddings), jnp.float32)
    out2 = jax.block_until_ready(
        domain_classifier(x2, w1, b1, w2, b2, w3, b3, block_b=128,
                          matmul_dtype=None))
    ref2 = _reference(x2, w1, b1, w2, b2, w3, b3)
    assert out2.shape == (batch2, 2), out2.shape
    assert jnp.allclose(out2, ref2, atol=1e-5, rtol=1e-5), "f32 tiled mismatch"

    # --- Test 3: generic no-fold fallback path, f32 ---
    out2b = jax.block_until_ready(
        domain_classifier(x2, w1, b1, w2, b2, w3, b3, block_b=128,
                          matmul_dtype=None, fold=1))
    assert jnp.allclose(out2b, ref2, atol=1e-5, rtol=1e-5), "fold=1 mismatch"

    # --- Test 4: default path (bf16 MXU, lane fold, batch not divisible by 4) ---
    batch3 = 202
    x3 = jax.random.normal(kx3, (batch3, embeddings), jnp.float32)
    out3 = jax.block_until_ready(domain_classifier(x3, w1, b1, w2, b2, w3, b3))
    ref3 = _reference(x3, w1, b1, w2, b2, w3, b3)
    assert out3.shape == (batch3, 2), out3.shape
    assert jnp.allclose(out3, ref3, atol=5e-2, rtol=5e-2), "bf16 folded mismatch"

    print("KERNEL_OK")
</pallas_src>

<mosaic_0001>
module attributes {stable_mosaic.version = 11 : i64} {
  func.func @domain_classifier_kernel(%arg0: i32, %arg1: memref<8x128xf32, #tpu.memory_space<vmem>>, %arg2: memref<128x128xf32, #tpu.memory_space<vmem>>, %arg3: memref<128x64xf32, #tpu.memory_space<vmem>>, %arg4: memref<64x8xf32, #tpu.memory_space<vmem>>, %arg5: memref<1x384xf32, #tpu.memory_space<vmem>>, %arg6: memref<8x8xf32, #tpu.memory_space<vmem>>) attributes {dimension_semantics = [#tpu.dimension_semantics<parallel>], iteration_bounds = array<i64: 1>, scalar_prefetch = 0 : i64, scratch_operands = 0 : i64, tpu.core_type = #tpu.core_type<tc>, window_params = [{transform_indices = @transform_0, window_bounds = array<i64: 8, 128>}, {pipeline_mode = #tpu.pipeline_mode<synchronous>, transform_indices = @transform_1, window_bounds = array<i64: 128, 128>}, {pipeline_mode = #tpu.pipeline_mode<synchronous>, transform_indices = @transform_2, window_bounds = array<i64: 128, 64>}, {pipeline_mode = #tpu.pipeline_mode<synchronous>, transform_indices = @transform_3, window_bounds = array<i64: 64, 8>}, {pipeline_mode = #tpu.pipeline_mode<synchronous>, transform_indices = @transform_4, window_bounds = array<i64: 1, 384>}, {transform_indices = @transform_5, window_bounds = array<i64: 8, 8>}]} {
    %c0 = arith.constant 0 : index
    %c0_0 = arith.constant 0 : index
    %0 = vector.load %arg1[%c0, %c0_0] : memref<8x128xf32, #tpu.memory_space<vmem>>, vector<8x128xf32>
    %c0_1 = arith.constant 0 : index
    %c0_2 = arith.constant 0 : index
    %1 = vector.load %arg5[%c0_1, %c0_2] : memref<1x384xf32, #tpu.memory_space<vmem>>, vector<1x128xf32>
    %c0_3 = arith.constant 0 : index
    %c128 = arith.constant 128 : index
    %2 = vector.load %arg5[%c0_3, %c128] : memref<1x384xf32, #tpu.memory_space<vmem>>, vector<1x64xf32>
    %c0_4 = arith.constant 0 : index
    %c256 = arith.constant 256 : index
    %3 = vector.load %arg5[%c0_4, %c256] : memref<1x384xf32, #tpu.memory_space<vmem>>, vector<1x8xf32>
    %c0_5 = arith.constant 0 : index
    %c0_6 = arith.constant 0 : index
    %4 = vector.load %arg2[%c0_5, %c0_6] : memref<128x128xf32, #tpu.memory_space<vmem>>, vector<128x128xf32>
    %cst = arith.constant dense<0.000000e+00> : vector<8x128xf32>
    %5 = tpu.matmul %0, %4, %cst {dimension_numbers = #tpu.dot_dimension_numbers<[1], [0], [0], [1], [0, 0, 1, 1], [], []>} : vector<8x128xf32>, vector<128x128xf32>, vector<8x128xf32> -> vector<8x128xf32>
    %6 = vector.broadcast %1 : vector<1x128xf32> to vector<8x128xf32>
    %7 = arith.addf %5, %6 : vector<8x128xf32>
    %cst_7 = arith.constant 0.000000e+00 : f32
    %8 = vector.broadcast %cst_7 : f32 to vector<8x128xf32>
    %9 = arith.maximumf %7, %8 : vector<8x128xf32>
    %c0_8 = arith.constant 0 : index
    %c0_9 = arith.constant 0 : index
    %10 = vector.load %arg3[%c0_8, %c0_9] : memref<128x64xf32, #tpu.memory_space<vmem>>, vector<128x64xf32>
    %cst_10 = arith.constant dense<0.000000e+00> : vector<8x64xf32>
    %11 = tpu.matmul %9, %10, %cst_10 {dimension_numbers = #tpu.dot_dimension_numbers<[1], [0], [0], [1], [0, 0, 1, 1], [], []>} : vector<8x128xf32>, vector<128x64xf32>, vector<8x64xf32> -> vector<8x64xf32>
    %12 = vector.broadcast %2 : vector<1x64xf32> to vector<8x64xf32>
    %13 = arith.addf %11, %12 : vector<8x64xf32>
    %cst_11 = arith.constant 0.000000e+00 : f32
    %14 = vector.broadcast %cst_11 : f32 to vector<8x64xf32>
    %15 = arith.maximumf %13, %14 : vector<8x64xf32>
    %c0_12 = arith.constant 0 : index
    %c0_13 = arith.constant 0 : index
    %16 = vector.load %arg4[%c0_12, %c0_13] : memref<64x8xf32, #tpu.memory_space<vmem>>, vector<64x8xf32>
    %cst_14 = arith.constant dense<0.000000e+00> : vector<8x8xf32>
    %17 = tpu.matmul %15, %16, %cst_14 {dimension_numbers = #tpu.dot_dimension_numbers<[1], [0], [0], [1], [0, 0, 1, 1], [], []>} : vector<8x64xf32>, vector<64x8xf32>, vector<8x8xf32> -> vector<8x8xf32>
    %18 = vector.broadcast %3 : vector<1x8xf32> to vector<8x8xf32>
    %19 = arith.addf %17, %18 : vector<8x8xf32>
    %c0_15 = arith.constant 0 : index
    %c0_16 = arith.constant 0 : index
    %20 = vector.load %arg6[%c0_15, %c0_16] : memref<8x8xf32, #tpu.memory_space<vmem>>, vector<8x8xf32>
    tpu.vector_store %arg6[%c0_15, %c0_16], %19 {strides = array<i32>} : memref<8x8xf32, #tpu.memory_space<vmem>>, vector<8x8xf32>,
    return
  }
  func.func @transform_0(%arg0: i32) -> (i32, i32) {
    %c0_i32 = arith.constant 0 : i32
    %c0_i32_0 = arith.constant 0 : i32
    return %arg0, %c0_i32 : i32, i32
  }
  func.func @transform_1(%arg0: i32) -> (i32, i32) {
    %c0_i32 = arith.constant 0 : i32
    %c0_i32_0 = arith.constant 0 : i32
    %c0_i32_1 = arith.constant 0 : i32
    return %c0_i32, %c0_i32_0 : i32, i32
  }
  func.func @transform_2(%arg0: i32) -> (i32, i32) {
    %c0_i32 = arith.constant 0 : i32
    %c0_i32_0 = arith.constant 0 : i32
    %c0_i32_1 = arith.constant 0 : i32
    return %c0_i32, %c0_i32_0 : i32, i32
  }
  func.func @transform_3(%arg0: i32) -> (i32, i32) {
    %c0_i32 = arith.constant 0 : i32
    %c0_i32_0 = arith.constant 0 : i32
    %c0_i32_1 = arith.constant 0 : i32
    return %c0_i32, %c0_i32_0 : i32, i32
  }
  func.func @transform_4(%arg0: i32) -> (i32, i32) {
    %c0_i32 = arith.constant 0 : i32
    %c0_i32_0 = arith.constant 0 : i32
    %c0_i32_1 = arith.constant 0 : i32
    return %c0_i32, %c0_i32_0 : i32, i32
  }
  func.func @transform_5(%arg0: i32) -> (i32, i32) {
    %c0_i32 = arith.constant 0 : i32
    %c0_i32_0 = arith.constant 0 : i32
    return %arg0, %c0_i32 : i32, i32
  }
}

</mosaic_0001>

<llo_original>
// kernel: domain_classifier.1
$region0: #{domain_classifier.1}
  #allocation0 [shape = 'u32[]', space=smem, size = 0x4, offset = 0x4, fixed_abs, tag = 'smem constant byte address 0x4 - core index']
  #allocation1 [shape = 'u32[144,128]{1,0:T(1,128)}', space=vmem, size = 0x12000, scoped, tag = 'internal scratch']
  %s0 = inlined_call_operand.vmem [shape: f32[2,128], index: 0, kind: input, shape index: {}]
  %s1 = inlined_call_operand.vmem [shape: f32[128,128], index: 1, kind: input, shape index: {}]
  %s2 = inlined_call_operand.vmem [shape: f32[128,64], index: 2, kind: input, shape index: {}]
  %s3 = inlined_call_operand.vmem [shape: f32[64,8], index: 3, kind: input, shape index: {}]
  %s4 = inlined_call_operand.vmem [shape: f32[1,384], index: 4, kind: input, shape index: {}]
  %s5 = inlined_call_operand.vmem [shape: f32[2,8], index: 5, kind: output, shape index: {}]
  %s6 = sld [smem:[#allocation0]]
  $region60: #{domain_classifier.1} parent=0
    _
  %s8 = ssub.s32 1, %s6
  %s9 = scalar_select 0, %s8, %s6
  $region1: #{domain_classifier.1} parent=0
    #allocation2 [shape = 'u8[4096]{0}', space=vmem, size = 0x1000, scoped, tag = 'output window, operand 0, single buffered']
    // Predicated region
    $region2: #{domain_classifier.1} parent=1 // pred_check
      _
    $region3: #{domain_classifier.1} parent=1 // pred_check_branch
      %11 = sbr.rel (0) target = $region5
    $region4: #{domain_classifier.1} parent=1 // pred_region
      _
    $region5: #{domain_classifier.1} parent=1 // pred_fallthru
      _
    // Predicated region
    $region6: #{domain_classifier.1} parent=1 // pred_check
      _
    $region7: #{domain_classifier.1} parent=1 // pred_check_branch
      %13 = sbr.rel (0) target = $region9
    $region8: #{domain_classifier.1} parent=1 // pred_region
      _
    $region9: #{domain_classifier.1} parent=1 // pred_fallthru
      _
    // Predicated region
    $region10: #{domain_classifier.1} parent=1 // pred_check
      _
    $region11: #{domain_classifier.1} parent=1 // pred_check_branch
      %15 = sbr.rel (0) target = $region13
    $region12: #{domain_classifier.1} parent=1 // pred_region
      _
    $region13: #{domain_classifier.1} parent=1 // pred_fallthru
      _
    // Predicated region
    $region14: #{domain_classifier.1} parent=1 // pred_check
      _
    $region15: #{domain_classifier.1} parent=1 // pred_check_branch
      %17 = sbr.rel (0) target = $region17
    $region16: #{domain_classifier.1} parent=1 // pred_region
      _
    $region17: #{domain_classifier.1} parent=1 // pred_fallthru
      _
    // Predicated region
    $region18: #{domain_classifier.1} parent=1 // pred_check
      _
    $region19: #{domain_classifier.1} parent=1 // pred_check_branch
      %19 = sbr.rel (0) target = $region21
    $region20: #{domain_classifier.1} parent=1 // pred_region
      _
    $region21: #{domain_classifier.1} parent=1 // pred_fallthru
      _
    %v20 = vld [vmem:[%s0] sm:$0xff]
    %v21 = vld [vmem:[%s4] sm:$0x1]
    %v22 = vld [vmem:[%s4 + $0x1] sm:$0x1]
    %v23 = vld [vmem:[%s4 + $0x2] sm:$0x1]
    %v24 = vld [vmem:[%s1] sm:$0xff]
    %v25 = vld [vmem:[%s1 + $0x8] sm:$0xff]
    %v26 = vld [vmem:[%s1 + $0x10] sm:$0xff]
    %v27 = vld [vmem:[%s1 + $0x18] sm:$0xff]
    %v28 = vld [vmem:[%s1 + $0x20] sm:$0xff]
    %v29 = vld [vmem:[%s1 + $0x28] sm:$0xff]
    %v30 = vld [vmem:[%s1 + $0x30] sm:$0xff]
    %v31 = vld [vmem:[%s1 + $0x38] sm:$0xff]
    %v32 = vld [vmem:[%s1 + $0x40] sm:$0xff]
    %v33 = vld [vmem:[%s1 + $0x48] sm:$0xff]
    %v34 = vld [vmem:[%s1 + $0x50] sm:$0xff]
    %v35 = vld [vmem:[%s1 + $0x58] sm:$0xff]
    %v36 = vld [vmem:[%s1 + $0x60] sm:$0xff]
    %v37 = vld [vmem:[%s1 + $0x68] sm:$0xff]
    %v38 = vld [vmem:[%s1 + $0x70] sm:$0xff]
    %v39 = vld [vmem:[%s1 + $0x78] sm:$0xff]
    %v41 = vlaneseq
    %v42 = vshrl.u32 %v41, 7
    %v43 = vsub.s32 0, %v42
    %v44 = vrot.slane %v21, %v43
    %46 = vmatprep.subr.mxu0 0.0
    %47 = vmatpush1.msra.mxu0 %v39
    %48 = vmatprep.subr.mxu0 0.0
    %49 = vmatpush1.msra.mxu0 %v38
    %50 = vmatprep.subr.mxu0 0.0
    %51 = vmatpush1.msra.mxu0 %v37
    %52 = vmatprep.subr.mxu0 0.0
    %53 = vmatpush1.msra.mxu0 %v36
    %54 = vmatprep.subr.mxu0 0.0
    %55 = vmatpush1.msra.mxu0 %v35
    %56 = vmatprep.subr.mxu0 0.0
    %57 = vmatpush1.msra.mxu0 %v34
    %58 = vmatprep.subr.mxu0 0.0
    %59 = vmatpush1.msra.mxu0 %v33
    %60 = vmatprep.subr.mxu0 0.0
    %61 = vmatpush1.msra.mxu0 %v32
    %62 = vmatprep.subr.mxu0 0.0
    %63 = vmatpush1.msra.mxu0 %v31
    %64 = vmatprep.subr.mxu0 0.0
    %65 = vmatpush1.msra.mxu0 %v30
    %66 = vmatprep.subr.mxu0 0.0
    %67 = vmatpush1.msra.mxu0 %v29
    %68 = vmatprep.subr.mxu0 0.0
    %69 = vmatpush1.msra.mxu0 %v28
    %70 = vmatprep.subr.mxu0 0.0
    %71 = vmatpush1.msra.mxu0 %v27
    %72 = vmatprep.subr.mxu0 0.0
    %73 = vmatpush1.msra.mxu0 %v26
    %74 = vmatprep.subr.mxu0 0.0
    %75 = vmatpush1.msra.mxu0 %v25
    %76 = vmatprep.subr.mxu0 0.0
    %77 = vmatpush1.msra.mxu0 %v24
    %78 = vmatprep.subr.mxu0 0.0
    %79 = vmatpush2.msra.mxu0 0.0
    %80 = vmatprep.subr.mxu0 0.0
    %81 = vmatpush2.msra.mxu0 0.0
    %82 = vmatprep.subr.mxu0 0.0
    %83 = vmatpush2.msra.mxu0 0.0
    %84 = vmatprep.subr.mxu0 0.0
    %85 = vmatpush2.msra.mxu0 0.0
    %86 = vmatprep.subr.mxu0 0.0
    %87 = vmatpush2.msra.mxu0 0.0
    %88 = vmatprep.subr.mxu0 0.0
    %89 = vmatpush2.msra.mxu0 0.0
    %90 = vmatprep.subr.mxu0 0.0
    %91 = vmatpush2.msra.mxu0 0.0
    %92 = vmatprep.subr.mxu0 0.0
    %93 = vmatpush2.msra.mxu0 0.0
    %94 = vmatprep.subr.mxu0 0.0
    %95 = vmatpush2.msra.mxu0 0.0
    %96 = vmatprep.subr.mxu0 0.0
    %97 = vmatpush2.msra.mxu0 0.0
    %98 = vmatprep.subr.mxu0 0.0
    %99 = vmatpush2.msra.mxu0 0.0
    %100 = vmatprep.subr.mxu0 0.0
    %101 = vmatpush2.msra.mxu0 0.0
    %102 = vmatprep.subr.mxu0 0.0
    %103 = vmatpush2.msra.mxu0 0.0
    %104 = vmatprep.subr.mxu0 0.0
    %105 = vmatpush2.msra.mxu0 0.0
    %106 = vmatprep.subr.mxu0 0.0
    %107 = vmatpush2.msra.mxu0 0.0
    %108 = vmatprep.subr.mxu0 0.0
    %109 = vmatpush2.msra.mxu0 0.0
    %110 = vmatprep.mubr.f32.mxu0 0.0
    %111 = vmatmul.mubr.f32.gmra.mxu0 %v20
    %v112 = vpop.f32.mrf.mxu0
    %v113 = vadd.f32 %v44, %v112
    %v114 = vpop.f32.mrf.mxu0
    %115 = vdwg.mxu0
    %v116 = vmax.f32 %v113, 0.0
    %v117 = vld [vmem:[%s2] sm:$0xff]
    %v118 = vld [vmem:[%s2 + $0x8] sm:$0xff]
    %v119 = vld [vmem:[%s2 + $0x10] sm:$0xff]
    %v120 = vld [vmem:[%s2 + $0x18] sm:$0xff]
    %v121 = vld [vmem:[%s2 + $0x20] sm:$0xff]
    %v122 = vld [vmem:[%s2 + $0x28] sm:$0xff]
    %v123 = vld [vmem:[%s2 + $0x30] sm:$0xff]
    %v124 = vld [vmem:[%s2 + $0x38] sm:$0xff]
    %v125 = vld [vmem:[%s2 + $0x40] sm:$0xff]
    %v126 = vld [vmem:[%s2 + $0x48] sm:$0xff]
    %v127 = vld [vmem:[%s2 + $0x50] sm:$0xff]
    %v128 = vld [vmem:[%s2 + $0x58] sm:$0xff]
    %v129 = vld [vmem:[%s2 + $0x60] sm:$0xff]
    %v130 = vld [vmem:[%s2 + $0x68] sm:$0xff]
    %v131 = vld [vmem:[%s2 + $0x70] sm:$0xff]
    %v132 = vld [vmem:[%s2 + $0x78] sm:$0xff]
    %v134 = vlaneseq
    %v135 = vshrl.u32 %v134, 7
    %v136 = vsub.s32 0, %v135
    %v137 = vrot.slane %v22, %v136
    %139 = vmatprep.subr.mxu0 0.0
    %140 = vmatpush1.msra.mxu0 %v132
    %141 = vmatprep.subr.mxu0 0.0
    %142 = vmatpush1.msra.mxu0 %v131
    %143 = vmatprep.subr.mxu0 0.0
    %144 = vmatpush1.msra.mxu0 %v130
    %145 = vmatprep.subr.mxu0 0.0
    %146 = vmatpush1.msra.mxu0 %v129
    %147 = vmatprep.subr.mxu0 0.0
    %148 = vmatpush1.msra.mxu0 %v128
    %149 = vmatprep.subr.mxu0 0.0
    %150 = vmatpush1.msra.mxu0 %v127
    %151 = vmatprep.subr.mxu0 0.0
    %152 = vmatpush1.msra.mxu0 %v126
    %153 = vmatprep.subr.mxu0 0.0
    %154 = vmatpush1.msra.mxu0 %v125
    %155 = vmatprep.subr.mxu0 0.0
    %156 = vmatpush1.msra.mxu0 %v124
    %157 = vmatprep.subr.mxu0 0.0
    %158 = vmatpush1.msra.mxu0 %v123
    %159 = vmatprep.subr.mxu0 0.0
    %160 = vmatpush1.msra.mxu0 %v122
    %161 = vmatprep.subr.mxu0 0.0
    %162 = vmatpush1.msra.mxu0 %v121
    %163 = vmatprep.subr.mxu0 0.0
    %164 = vmatpush1.msra.mxu0 %v120
    %165 = vmatprep.subr.mxu0 0.0
    %166 = vmatpush1.msra.mxu0 %v119
    %167 = vmatprep.subr.mxu0 0.0
    %168 = vmatpush1.msra.mxu0 %v118
    %169 = vmatprep.subr.mxu0 0.0
    %170 = vmatpush1.msra.mxu0 %v117
    %171 = vmatprep.subr.mxu0 0.0
    %172 = vmatpush2.msra.mxu0 0.0
    %173 = vmatprep.subr.mxu0 0.0
    %174 = vmatpush2.msra.mxu0 0.0
    %175 = vmatprep.subr.mxu0 0.0
    %176 = vmatpush2.msra.mxu0 0.0
    %177 = vmatprep.subr.mxu0 0.0
    %178 = vmatpush2.msra.mxu0 0.0
    %179 = vmatprep.subr.mxu0 0.0
    %180 = vmatpush2.msra.mxu0 0.0
    %181 = vmatprep.subr.mxu0 0.0
    %182 = vmatpush2.msra.mxu0 0.0
    %183 = vmatprep.subr.mxu0 0.0
    %184 = vmatpush2.msra.mxu0 0.0
    %185 = vmatprep.subr.mxu0 0.0
    %186 = vmatpush2.msra.mxu0 0.0
    %187 = vmatprep.subr.mxu0 0.0
    %188 = vmatpush2.msra.mxu0 0.0
    %189 = vmatprep.subr.mxu0 0.0
    %190 = vmatpush2.msra.mxu0 0.0
    %191 = vmatprep.subr.mxu0 0.0
    %192 = vmatpush2.msra.mxu0 0.0
    %193 = vmatprep.subr.mxu0 0.0
    %194 = vmatpush2.msra.mxu0 0.0
    %195 = vmatprep.subr.mxu0 0.0
    %196 = vmatpush2.msra.mxu0 0.0
    %197 = vmatprep.subr.mxu0 0.0
    %198 = vmatpush2.msra.mxu0 0.0
    %199 = vmatprep.subr.mxu0 0.0
    %200 = vmatpush2.msra.mxu0 0.0
    %201 = vmatprep.subr.mxu0 0.0
    %202 = vmatpush2.msra.mxu0 0.0
    %203 = vmatprep.mubr.f32.mxu0 0.0
    %204 = vmatmul.mubr.f32.gmra.mxu0 %v116
    %v205 = vpop.f32.mrf.mxu0
    %v206 = vadd.f32 %v137, %v205
    %v207 = vpop.f32.mrf.mxu0
    %208 = vdwg.mxu0
    %v209 = vmax.f32 %v206, 0.0
    %v210 = vld [vmem:[%s3] sm:$0xff]
    %v211 = vld [vmem:[%s3 + $0x8] sm:$0xff]
    %v212 = vld [vmem:[%s3 + $0x10] sm:$0xff]
    %v213 = vld [vmem:[%s3 + $0x18] sm:$0xff]
    %v214 = vld [vmem:[%s3 + $0x20] sm:$0xff]
    %v215 = vld [vmem:[%s3 + $0x28] sm:$0xff]
    %v216 = vld [vmem:[%s3 + $0x30] sm:$0xff]
    %v217 = vld [vmem:[%s3 + $0x38] sm:$0xff]
    %v219 = vlaneseq
    %v220 = vshrl.u32 %v219, 7
    %v221 = vsub.s32 0, %v220
    %v222 = vrot.slane %v23, %v221
    %vm224 = vcmask 523264
    %v226 = vsel %vm224, %v209, 0
    %228 = vmatprep.subr.mxu0 0.0
    %229 = vmatpush1.msra.mxu0 0.0
    %230 = vmatprep.subr.mxu0 0.0
    %231 = vmatpush1.msra.mxu0 0.0
    %232 = vmatprep.subr.mxu0 0.0
    %233 = vmatpush1.msra.mxu0 0.0
    %234 = vmatprep.subr.mxu0 0.0
    %235 = vmatpush1.msra.mxu0 0.0
    %236 = vmatprep.subr.mxu0 0.0
    %237 = vmatpush1.msra.mxu0 0.0
    %238 = vmatprep.subr.mxu0 0.0
    %239 = vmatpush1.msra.mxu0 0.0
    %240 = vmatprep.subr.mxu0 0.0
    %241 = vmatpush1.msra.mxu0 0.0
    %242 = vmatprep.subr.mxu0 0.0
    %243 = vmatpush1.msra.mxu0 0.0
    %244 = vmatprep.subr.mxu0 0.0
    %245 = vmatpush1.msra.mxu0 %v217
    %246 = vmatprep.subr.mxu0 0.0
    %247 = vmatpush1.msra.mxu0 %v216
    %248 = vmatprep.subr.mxu0 0.0
    %249 = vmatpush1.msra.mxu0 %v215
    %250 = vmatprep.subr.mxu0 0.0
    %251 = vmatpush1.msra.mxu0 %v214
    %252 = vmatprep.subr.mxu0 0.0
    %253 = vmatpush1.msra.mxu0 %v213
    %254 = vmatprep.subr.mxu0 0.0
    %255 = vmatpush1.msra.mxu0 %v212
    %256 = vmatprep.subr.mxu0 0.0
    %257 = vmatpush1.msra.mxu0 %v211
    %258 = vmatprep.subr.mxu0 0.0
    %259 = vmatpush1.msra.mxu0 %v210
    %260 = vmatprep.subr.mxu0 0.0
    %261 = vmatpush2.msra.mxu0 0.0
    %262 = vmatprep.subr.mxu0 0.0
    %263 = vmatpush2.msra.mxu0 0.0
    %264 = vmatprep.subr.mxu0 0.0
    %265 = vmatpush2.msra.mxu0 0.0
    %266 = vmatprep.subr.mxu0 0.0
    %267 = vmatpush2.msra.mxu0 0.0
    %268 = vmatprep.subr.mxu0 0.0
    %269 = vmatpush2.msra.mxu0 0.0
    %270 = vmatprep.subr.mxu0 0.0
    %271 = vmatpush2.msra.mxu0 0.0
    %272 = vmatprep.subr.mxu0 0.0
    %273 = vmatpush2.msra.mxu0 0.0
    %274 = vmatprep.subr.mxu0 0.0
    %275 = vmatpush2.msra.mxu0 0.0
    %276 = vmatprep.subr.mxu0 0.0
    %277 = vmatpush2.msra.mxu0 0.0
    %278 = vmatprep.subr.mxu0 0.0
    %279 = vmatpush2.msra.mxu0 0.0
    %280 = vmatprep.subr.mxu0 0.0
    %281 = vmatpush2.msra.mxu0 0.0
    %282 = vmatprep.subr.mxu0 0.0
    %283 = vmatpush2.msra.mxu0 0.0
    %284 = vmatprep.subr.mxu0 0.0
    %285 = vmatpush2.msra.mxu0 0.0
    %286 = vmatprep.subr.mxu0 0.0
    %287 = vmatpush2.msra.mxu0 0.0
    %288 = vmatprep.subr.mxu0 0.0
    %289 = vmatpush2.msra.mxu0 0.0
    %290 = vmatprep.subr.mxu0 0.0
    %291 = vmatpush2.msra.mxu0 0.0
    %292 = vmatprep.mubr.f32.mxu0 0.0
    %293 = vmatmul.mubr.f32.gmra.mxu0 %v226
    %v294 = vpop.f32.mrf.mxu0
    %v295 = vadd.f32 %v222, %v294
    %v296 = vpop.f32.mrf.mxu0
    %297 = vdwg.mxu0
    %vm298 = vcmask 64512
    %299 = vst.msk [vmem:[#allocation2] sm:$0xff] %vm298, %v295
    // Predicated region
    $region22: #{domain_classifier.1} parent=1 // pred_check
      _
    $region23: #{domain_classifier.1} parent=1 // pred_check_branch
      %301 = sbr.rel (0) target = $region25
    $region24: #{domain_classifier.1} parent=1 // pred_region
      // Predicated region
      $region26: #{domain_classifier.1} parent=24 // pred_check
        _
      $region27: #{domain_classifier.1} parent=24 // pred_check_branch
        %303 = sbr.rel (0) target = $region29
      $region28: #{domain_classifier.1} parent=24 // pred_region
        // Predicated region
        $region30: #{domain_classifier.1} parent=28 // pred_check
          _
        $region31: #{domain_classifier.1} parent=28 // pred_check_branch
          %305 = sbr.rel target = $region33
        $region32: #{domain_classifier.1} parent=28 // pred_region
          // Predicated region
          $region45: #{domain_classifier.1} parent=32 // pred_check
            _
          $region46: #{domain_classifier.1} parent=32 // pred_check_branch
            %321 = sbr.rel (0) target = $region48
          $region47: #{domain_classifier.1} parent=32 // pred_region
            %s323 = ssub.s32 4, 1
            loop: start=0, step=1, limit=1
            $region49: #{domain_classifier.1} parent=47 // loop_pre_header
              _
            $region50: #{domain_classifier.1} parent=47 // loop_header
              %s325 = sphi 0, %s329
              %p326 = scmp.ge.s32.totalorder %s325, 1
              %s330 = sphi [#allocation2], [#allocation2]
              %s331 = sphi %s5, %s5
            $region51: #{domain_classifier.1} parent=47 // loop_header_branch
              %328 = sbr.rel (%p326) target = $region55
            $region52: #{domain_classifier.1} parent=47 // loop_body
              %v332 = vld [vmem:[%s330] sm:%s323]
              %333 = vst [vmem:[%s331] sm:%s323] %v332
            $region53: #{domain_classifier.1} parent=47 // loop_footer
              %s329 = sadd.s32 1, %s325
            $region54: #{domain_classifier.1} parent=47 // loop_footer_branch
              %324 = sbr.rel target = $region50
            $region55: #{domain_classifier.1} parent=47 // loop_exit
              _
          $region48: #{domain_classifier.1} parent=32 // pred_fallthru
            _
        $region33: #{domain_classifier.1} parent=28 // pred_fallthru
          _
        // Predicated region
        $region34: #{domain_classifier.1} parent=28 // pred_check
          _
        $region35: #{domain_classifier.1} parent=28 // pred_check_branch
          %307 = sbr.rel (0) target = $region37
        $region36: #{domain_classifier.1} parent=28 // pred_region
          %s309 = ssub.s32 4, 1
          loop: start=0, step=1, limit=1
          $region38: #{domain_classifier.1} parent=36 // loop_pre_header
            _
          $region39: #{domain_classifier.1} parent=36 // loop_header
            %s311 = sphi 0, %s315
            %p312 = scmp.ge.s32.totalorder %s311, 1
            %s316 = sphi [#allocation2], [#allocation2]
            %s317 = sphi %s5, %s5
          $region40: #{domain_classifier.1} parent=36 // loop_header_branch
            %314 = sbr.rel (%p312) target = $region44
          $region41: #{domain_classifier.1} parent=36 // loop_body
            %v318 = vld [vmem:[%s316] sm:%s309]
            %319 = vst [vmem:[%s317] sm:%s309] %v318
          $region42: #{domain_classifier.1} parent=36 // loop_footer
            %s315 = sadd.s32 1, %s311
          $region43: #{domain_classifier.1} parent=36 // loop_footer_branch
            %310 = sbr.rel target = $region39
          $region44: #{domain_classifier.1} parent=36 // loop_exit
            _
        $region37: #{domain_classifier.1} parent=28 // pred_fallthru
          _
      $region29: #{domain_classifier.1} parent=24 // pred_fallthru
        _
      %334 = vnop
    $region25: #{domain_classifier.1} parent=1 // pred_fallthru
      _
    // Predicated region
    $region56: #{domain_classifier.1} parent=1 // pred_check
      _
    $region57: #{domain_classifier.1} parent=1 // pred_check_branch
      %336 = sbr.rel (0) target = $region59
    $region58: #{domain_classifier.1} parent=1 // pred_region
      _
    $region59: #{domain_classifier.1} parent=1 // pred_fallthru
      _

</llo_original>
